<compile_context>
chip_gen: v7x
topology: tpu7x:2x2x1
jax: 0.10.0
libtpu: 0.0.40
codegen_flags: <defaults>
</compile_context>

<pallas_src>
import jax
import jax.numpy as jnp
from jax.experimental import pallas as pl
from jax.experimental.pallas import tpu as pltpu


def _round_up(x: int, m: int) -> int:
    return ((x + m - 1) // m) * m


def _round_down(x: int, m: int) -> int:
    return (x // m) * m


def _readout_kernel(x_ref, w1_ref, b1_ref, w2_ref, b2_ref, o_ref):
    # layer1 on the MXU: (tile, lanes) @ (lanes, lanes), input dtype, f32 accumulation.
    h = jnp.dot(x_ref[...], w1_ref[...], preferred_element_type=jnp.float32)
    h = h + b1_ref[...]                        # bias pre-tiled per packed group (f32)
    h = h * jax.nn.sigmoid(h)                  # SiLU kept in f32 (v5e: no bf16 EUP/VPU)
    # layer2: block-diagonal (lanes, pack) matmul -> one output column per packed sample.
    o = jnp.dot(h, w2_ref[...], preferred_element_type=jnp.float32)
    o_ref[...] = (o + b2_ref[0]).astype(o_ref.dtype)


def _pallas_readout(xp, w1_bd, b1_t, w2_bd, b2, *, tile_rows, n_tiles, pack, lanes,
                    vmem_limit_bytes, semantics):
    return pl.pallas_call(
        _readout_kernel,
        out_shape=jax.ShapeDtypeStruct((n_tiles * tile_rows, pack), jnp.float32),
        grid_spec=pltpu.PrefetchScalarGridSpec(
            num_scalar_prefetch=0,
            grid=(n_tiles,),
            in_specs=[
                pl.BlockSpec((tile_rows, lanes), lambda i: (i, 0)),  # x (streamed)
                pl.BlockSpec((lanes, lanes), lambda i: (0, 0)),      # W1 block-diag (resident)
                pl.BlockSpec((1, lanes), lambda i: (0, 0)),          # b1 tiled (resident)
                pl.BlockSpec((lanes, pack), lambda i: (0, 0)),       # W2 block-diag (resident)
                pl.BlockSpec(memory_space=pltpu.MemorySpace.SMEM),   # b2 scalar
            ],
            out_specs=pl.BlockSpec((tile_rows, pack), lambda i: (i, 0)),
        ),
        compiler_params=pltpu.CompilerParams(
            dimension_semantics=(semantics,),
            vmem_limit_bytes=vmem_limit_bytes,
        ),
    )(xp, w1_bd, b1_t, w2_bd, b2)


def readout_linear_mlp(input_tensor, emb, params, *, tile_b=32768):
    """ReadoutLinearMLP.forward (way == 0). `emb` is unused (interface parity)."""
    del emb
    x = input_tensor
    B, C = x.shape
    dtype = x.dtype
    itemsize = jnp.dtype(dtype).itemsize

    # ---- lane packing: `pack` samples per 128-lane row (free bitcast reshape) ----
    pack = 128 // C if (C <= 128 and 128 % C == 0) else 1
    lanes = C * pack

    # ---- one-time packed parameters (would live on the module in production) ----
    w1 = params["w1"].reshape(C, C).astype(jnp.float32)        # (in, out) layout
    b1 = params["b1"].reshape(1, C).astype(jnp.float32)
    w2 = params["w2"].reshape(C, 1).astype(jnp.float32)
    b2 = params["b2"].reshape(1).astype(jnp.float32)           # scalar -> SMEM
    eye = jnp.eye(pack, dtype=jnp.float32)
    w1_bd = jnp.kron(eye, w1).astype(dtype)                    # (lanes, lanes) block-diag
    w2_bd = jnp.kron(eye, w2)                                  # (lanes, pack) block-diag, f32
    b1_t = jnp.tile(b1, (1, pack))                             # (1, lanes), f32

    # ---- rare fallback: B not a multiple of `pack` forces one small pad (copy) ----
    xa = x
    if B % pack != 0:
        xa = jnp.pad(x, ((0, pack - B % pack), (0, 0)))
    P = xa.shape[0] // pack
    xp = xa.reshape(P, lanes)            # free view: rows are contiguous in HBM

    # ---- tile selection -----------------------------------------------------------
    # Budget: double-buffered x tile + (lane-padded) f32 out tile <= ~24 MiB so the
    # scoped VMEM limit is safe on every generation (v7x: 64 MiB physical per TC).
    per_row_bytes = 2 * _round_up(lanes, 128) * itemsize + 2 * 128 * 4
    tile_cap = max(8, _round_down((24 << 20) // per_row_bytes, 8))
    tile_max = min(max(8, _round_down(max(tile_b // pack, 8), 8)), tile_cap)
    if P >= 16:
        # at least two grid tiles (v7x has 2 TensorCores; also overlaps DMA & compute)
        tile_rows = min(tile_max, max(8, _round_down(P // 2, 8)))
    else:
        tile_rows = 8
    n_full = P // tile_rows
    tail_rows = P - n_full * tile_rows
    vmem_limit = int(min(per_row_bytes * tile_rows + (6 << 20), 64 << 20))

    parts = []
    if n_full > 0:
        # Main call walks only full, in-bounds tiles of xp — no full-array padding/copy.
        parts.append(_pallas_readout(
            xp, w1_bd, b1_t, w2_bd, b2,
            tile_rows=tile_rows, n_tiles=n_full, pack=pack, lanes=lanes,
            vmem_limit_bytes=vmem_limit, semantics="parallel"))
    if tail_rows > 0:
        # Ragged tail: slice + pad a copy bounded by one tile (<< total HBM traffic).
        tp = _round_up(tail_rows, 8)
        x_tail = xp[n_full * tile_rows:]
        x_tail = jnp.pad(x_tail, ((0, tp - tail_rows), (0, 0)))
        tail_out = _pallas_readout(
            x_tail, w1_bd, b1_t, w2_bd, b2,
            tile_rows=tp, n_tiles=1, pack=pack, lanes=lanes,
            vmem_limit_bytes=int(min(per_row_bytes * tp + (6 << 20), 64 << 20)),
            semantics="arbitrary")
        parts.append(tail_out[:tail_rows])

    out = parts[0] if len(parts) == 1 else jnp.concatenate(parts, axis=0)  # (P, pack) f32
    # Layout plumbing back to (B, 1); cast back to the input dtype (f32 accumulation inside).
    return out.reshape(-1)[:B].reshape(B, 1).astype(dtype)


def _reference(x, params):
    h = x @ params["w1"].reshape(x.shape[1], -1) + params["b1"].reshape(1, -1)
    h = h * jax.nn.sigmoid(h)
    return h @ params["w2"].reshape(-1, 1) + params["b2"].reshape(1, 1)


if __name__ == "__main__":
    C = 32  # n_dim (channels)

    key = jax.random.PRNGKey(0)
    kx, kemb, kw1, kb1, kw2, kb2, kx2, kx3 = jax.random.split(key, 8)

    # nn.Linear-style uniform(-1/sqrt(fan_in), 1/sqrt(fan_in)) init, deterministic.
    bound = 1.0 / (C ** 0.5)
    params = {
        "w1": jax.random.uniform(kw1, (C, C), jnp.float32, -bound, bound),
        "b1": jax.random.uniform(kb1, (1, C), jnp.float32, -bound, bound),
        "w2": jax.random.uniform(kw2, (C, 1), jnp.float32, -bound, bound),
        "b2": jax.random.uniform(kb2, (1, 1), jnp.float32, -bound, bound),
    }

    # Small case (tail-only path, interface parity with the torch module).
    B = 8
    x = jax.random.normal(kx, (B, C), jnp.float32)
    emb = jax.random.normal(kemb, (B, C), jnp.float32)  # unused, as in the torch module
    out = jax.block_until_ready(readout_linear_mlp(x, emb, params))
    ref = _reference(x, params)
    assert out.shape == (B, 1), out.shape
    assert jnp.allclose(out, ref, atol=1e-4, rtol=1e-4), "mismatch (small case)"

    # Multi-tile case: packed main path + ragged packed-row tail (B % 4 == 0).
    B2 = 300
    x2 = jax.random.normal(kx2, (B2, C), jnp.float32)
    out2 = jax.block_until_ready(readout_linear_mlp(x2, None, params, tile_b=512))
    ref2 = _reference(x2, params)
    assert out2.shape == (B2, 1), out2.shape
    assert jnp.allclose(out2, ref2, atol=1e-4, rtol=1e-4), "mismatch (tiled case)"

    # Pack-misaligned case (B % 4 != 0): exercises the small-pad fallback.
    B3 = 301
    x3 = jax.random.normal(kx3, (B3, C), jnp.float32)
    out3 = jax.block_until_ready(readout_linear_mlp(x3, None, params, tile_b=512))
    ref3 = _reference(x3, params)
    assert out3.shape == (B3, 1), out3.shape
    assert jnp.allclose(out3, ref3, atol=1e-4, rtol=1e-4), "mismatch (misaligned case)"

    print("KERNEL_OK")
</pallas_src>

<mosaic_0001>
module attributes {stable_mosaic.version = 11 : i64} {
  func.func @_readout_kernel(%arg0: i32, %arg1: memref<8x128xf32, #tpu.memory_space<vmem>>, %arg2: memref<128x128xf32, #tpu.memory_space<vmem>>, %arg3: memref<1x128xf32, #tpu.memory_space<vmem>>, %arg4: memref<128x4xf32, #tpu.memory_space<vmem>>, %arg5: memref<1xf32, #tpu.memory_space<smem>>, %arg6: memref<8x4xf32, #tpu.memory_space<vmem>>) attributes {dimension_semantics = [#tpu.dimension_semantics<arbitrary>], iteration_bounds = array<i64: 1>, scalar_prefetch = 0 : i64, scratch_operands = 0 : i64, tpu.core_type = #tpu.core_type<tc>, window_params = [{transform_indices = @transform_0, window_bounds = array<i64: 8, 128>}, {pipeline_mode = #tpu.pipeline_mode<synchronous>, transform_indices = @transform_1, window_bounds = array<i64: 128, 128>}, {pipeline_mode = #tpu.pipeline_mode<synchronous>, transform_indices = @transform_2, window_bounds = array<i64: 1, 128>}, {pipeline_mode = #tpu.pipeline_mode<synchronous>, transform_indices = @transform_3, window_bounds = array<i64: 128, 4>}, {transform_indices = @transform_4, window_bounds = array<i64: 1>}, {transform_indices = @transform_5, window_bounds = array<i64: 8, 4>}]} {
    %c0 = arith.constant 0 : index
    %c0_0 = arith.constant 0 : index
    %0 = vector.load %arg1[%c0, %c0_0] : memref<8x128xf32, #tpu.memory_space<vmem>>, vector<8x128xf32>
    %c0_1 = arith.constant 0 : index
    %c0_2 = arith.constant 0 : index
    %1 = vector.load %arg2[%c0_1, %c0_2] : memref<128x128xf32, #tpu.memory_space<vmem>>, vector<128x128xf32>
    %cst = arith.constant dense<0.000000e+00> : vector<8x128xf32>
    %2 = tpu.matmul %0, %1, %cst {dimension_numbers = #tpu.dot_dimension_numbers<[1], [0], [0], [1], [0, 0, 1, 1], [], []>} : vector<8x128xf32>, vector<128x128xf32>, vector<8x128xf32> -> vector<8x128xf32>
    %c0_3 = arith.constant 0 : index
    %c0_4 = arith.constant 0 : index
    %3 = vector.load %arg3[%c0_3, %c0_4] : memref<1x128xf32, #tpu.memory_space<vmem>>, vector<1x128xf32>
    %4 = vector.broadcast %3 : vector<1x128xf32> to vector<8x128xf32>
    %5 = arith.addf %2, %4 : vector<8x128xf32>
    %6 = arith.negf %5 : vector<8x128xf32>
    %7 = math.exp %6 : vector<8x128xf32>
    %cst_5 = arith.constant 1.000000e+00 : f32
    %8 = vector.broadcast %cst_5 : f32 to vector<8x128xf32>
    %9 = arith.addf %8, %7 : vector<8x128xf32>
    %10 = arith.divf %8, %9 : vector<8x128xf32>
    %11 = arith.mulf %5, %10 : vector<8x128xf32>
    %c0_6 = arith.constant 0 : index
    %c0_7 = arith.constant 0 : index
    %12 = vector.load %arg4[%c0_6, %c0_7] : memref<128x4xf32, #tpu.memory_space<vmem>>, vector<128x4xf32>
    %cst_8 = arith.constant dense<0.000000e+00> : vector<8x4xf32>
    %13 = tpu.matmul %11, %12, %cst_8 {dimension_numbers = #tpu.dot_dimension_numbers<[1], [0], [0], [1], [0, 0, 1, 1], [], []>} : vector<8x128xf32>, vector<128x4xf32>, vector<8x4xf32> -> vector<8x4xf32>
    %c0_9 = arith.constant 0 : index
    %14 = memref.load %arg5[%c0_9] : memref<1xf32, #tpu.memory_space<smem>>
    %15 = vector.broadcast %14 : f32 to vector<8x4xf32>
    %16 = arith.addf %13, %15 : vector<8x4xf32>
    %c0_10 = arith.constant 0 : index
    %c0_11 = arith.constant 0 : index
    %17 = vector.load %arg6[%c0_10, %c0_11] : memref<8x4xf32, #tpu.memory_space<vmem>>, vector<8x4xf32>
    tpu.vector_store %arg6[%c0_10, %c0_11], %16 {strides = array<i32>} : memref<8x4xf32, #tpu.memory_space<vmem>>, vector<8x4xf32>,
    return
  }
  func.func @transform_0(%arg0: i32) -> (i32, i32) {
    %c0_i32 = arith.constant 0 : i32
    %c0_i32_0 = arith.constant 0 : i32
    return %arg0, %c0_i32 : i32, i32
  }
  func.func @transform_1(%arg0: i32) -> (i32, i32) {
    %c0_i32 = arith.constant 0 : i32
    %c0_i32_0 = arith.constant 0 : i32
    %c0_i32_1 = arith.constant 0 : i32
    return %c0_i32, %c0_i32_0 : i32, i32
  }
  func.func @transform_2(%arg0: i32) -> (i32, i32) {
    %c0_i32 = arith.constant 0 : i32
    %c0_i32_0 = arith.constant 0 : i32
    %c0_i32_1 = arith.constant 0 : i32
    return %c0_i32, %c0_i32_0 : i32, i32
  }
  func.func @transform_3(%arg0: i32) -> (i32, i32) {
    %c0_i32 = arith.constant 0 : i32
    %c0_i32_0 = arith.constant 0 : i32
    %c0_i32_1 = arith.constant 0 : i32
    return %c0_i32, %c0_i32_0 : i32, i32
  }
  func.func @transform_4(%arg0: i32) -> i32 {
    %c0_i32 = arith.constant 0 : i32
    %c0_i32_0 = arith.constant 0 : i32
    return %c0_i32 : i32
  }
  func.func @transform_5(%arg0: i32) -> (i32, i32) {
    %c0_i32 = arith.constant 0 : i32
    %c0_i32_0 = arith.constant 0 : i32
    return %arg0, %c0_i32 : i32, i32
  }
}

</mosaic_0001>

<llo_original>
// kernel: tpu_custom_call.1
$region0: #{tpu_custom_call.1}
  #allocation0 [shape = 'u32[]', space=smem, size = 0x4, offset = 0x4, fixed_abs, tag = 'smem constant byte address 0x4 - core index']
  #allocation1 [shape = 'u32[144,128]{1,0:T(1,128)}', space=vmem, size = 0x12000, scoped, tag = 'internal scratch']
  #allocation2 [shape = 'f32[1]{0:T(128)S(6)}', space=smem, size = 0x200, scoped, tag = 'scoped memory for tpu_custom_call.1']
  %s0 = inlined_call_operand.vmem [shape: f32[8,128], index: 0, kind: input, shape index: {}]
  %s1 = inlined_call_operand.vmem [shape: f32[128,128], index: 1, kind: input, shape index: {}]
  %s2 = inlined_call_operand.vmem [shape: f32[1,128], index: 2, kind: input, shape index: {}]
  %s3 = inlined_call_operand.vmem [shape: f32[128,4], index: 3, kind: input, shape index: {}]
  %s4 = inlined_call_operand.<no memory space> [shape: f32[1], index: 4, kind: input, shape index: {}]
  %s5 = inlined_call_operand.vmem [shape: f32[8,4], index: 5, kind: output, shape index: {}]
  %s6 = sld [smem:[#allocation0]]
  $region30: #{tpu_custom_call.1} parent=0
    _
  %s8 = ssub.s32 1, %s6
  %s9 = scalar_select 0, %s8, %s6
  %10 = sst [smem:[#allocation2]] %s4
  // Predicated region
  $region2: #{tpu_custom_call.1} parent=0 // pred_check
    _
  $region3: #{tpu_custom_call.1} parent=0 // pred_check_branch
    %12 = sbr.rel (0) target = $region5
  $region4: #{tpu_custom_call.1} parent=0 // pred_region
    _
  $region5: #{tpu_custom_call.1} parent=0 // pred_fallthru
    _
  // Predicated region
  $region6: #{tpu_custom_call.1} parent=0 // pred_check
    _
  $region7: #{tpu_custom_call.1} parent=0 // pred_check_branch
    %14 = sbr.rel (0) target = $region9
  $region8: #{tpu_custom_call.1} parent=0 // pred_region
    _
  $region9: #{tpu_custom_call.1} parent=0 // pred_fallthru
    _
  // Predicated region
  $region10: #{tpu_custom_call.1} parent=0 // pred_check
    _
  $region11: #{tpu_custom_call.1} parent=0 // pred_check_branch
    %16 = sbr.rel (0) target = $region13
  $region12: #{tpu_custom_call.1} parent=0 // pred_region
    _
  $region13: #{tpu_custom_call.1} parent=0 // pred_fallthru
    _
  // Predicated region
  $region14: #{tpu_custom_call.1} parent=0 // pred_check
    _
  $region15: #{tpu_custom_call.1} parent=0 // pred_check_branch
    %18 = sbr.rel (0) target = $region17
  $region16: #{tpu_custom_call.1} parent=0 // pred_region
    _
  $region17: #{tpu_custom_call.1} parent=0 // pred_fallthru
    _
  // Predicated region
  $region18: #{tpu_custom_call.1} parent=0 // pred_check
    _
  $region19: #{tpu_custom_call.1} parent=0 // pred_check_branch
    %20 = sbr.rel (0) target = $region21
  $region20: #{tpu_custom_call.1} parent=0 // pred_region
    _
  $region21: #{tpu_custom_call.1} parent=0 // pred_fallthru
    _
  %v21 = vld [vmem:[%s0] sm:$0xff]
  %v22 = vld [vmem:[%s1] sm:$0xff]
  %v23 = vld [vmem:[%s1 + $0x8] sm:$0xff]
  %v24 = vld [vmem:[%s1 + $0x10] sm:$0xff]
  %v25 = vld [vmem:[%s1 + $0x18] sm:$0xff]
  %v26 = vld [vmem:[%s1 + $0x20] sm:$0xff]
  %v27 = vld [vmem:[%s1 + $0x28] sm:$0xff]
  %v28 = vld [vmem:[%s1 + $0x30] sm:$0xff]
  %v29 = vld [vmem:[%s1 + $0x38] sm:$0xff]
  %v30 = vld [vmem:[%s1 + $0x40] sm:$0xff]
  %v31 = vld [vmem:[%s1 + $0x48] sm:$0xff]
  %v32 = vld [vmem:[%s1 + $0x50] sm:$0xff]
  %v33 = vld [vmem:[%s1 + $0x58] sm:$0xff]
  %v34 = vld [vmem:[%s1 + $0x60] sm:$0xff]
  %v35 = vld [vmem:[%s1 + $0x68] sm:$0xff]
  %v36 = vld [vmem:[%s1 + $0x70] sm:$0xff]
  %v37 = vld [vmem:[%s1 + $0x78] sm:$0xff]
  %v38 = vld [vmem:[%s2] sm:$0x1]
  %v40 = vlaneseq
  %v41 = vshrl.u32 %v40, 7
  %v42 = vsub.s32 0, %v41
  %v43 = vrot.slane %v38, %v42
  %45 = vmatprep.subr.mxu0 0.0
  %46 = vmatpush1.msra.mxu0 %v22
  %47 = vmatprep.subr.mxu0 0.0
  %48 = vmatpush1.msra.mxu0 %v23
  %49 = vmatprep.subr.mxu0 0.0
  %50 = vmatpush1.msra.mxu0 %v24
  %51 = vmatprep.subr.mxu0 0.0
  %52 = vmatpush1.msra.mxu0 %v25
  %53 = vmatprep.subr.mxu0 0.0
  %54 = vmatpush1.msra.mxu0 %v26
  %55 = vmatprep.subr.mxu0 0.0
  %56 = vmatpush1.msra.mxu0 %v27
  %57 = vmatprep.subr.mxu0 0.0
  %58 = vmatpush1.msra.mxu0 %v28
  %59 = vmatprep.subr.mxu0 0.0
  %60 = vmatpush1.msra.mxu0 %v29
  %61 = vmatprep.subr.mxu0 0.0
  %62 = vmatpush1.msra.mxu0 %v30
  %63 = vmatprep.subr.mxu0 0.0
  %64 = vmatpush1.msra.mxu0 %v31
  %65 = vmatprep.subr.mxu0 0.0
  %66 = vmatpush1.msra.mxu0 %v32
  %67 = vmatprep.subr.mxu0 0.0
  %68 = vmatpush1.msra.mxu0 %v33
  %69 = vmatprep.subr.mxu0 0.0
  %70 = vmatpush1.msra.mxu0 %v34
  %71 = vmatprep.subr.mxu0 0.0
  %72 = vmatpush1.msra.mxu0 %v35
  %73 = vmatprep.subr.mxu0 0.0
  %74 = vmatpush1.msra.mxu0 %v36
  %75 = vmatprep.subr.mxu0 0.0
  %76 = vmatpush1.msra.mxu0 %v37
  %77 = vmatprep.subr.mxu0 0.0
  %78 = vmatpush1.msra.mxu0 0.0
  %79 = vmatprep.subr.mxu0 0.0
  %80 = vmatpush1.msra.mxu0 0.0
  %81 = vmatprep.subr.mxu0 0.0
  %82 = vmatpush1.msra.mxu0 0.0
  %83 = vmatprep.subr.mxu0 0.0
  %84 = vmatpush1.msra.mxu0 0.0
  %85 = vmatprep.subr.mxu0 0.0
  %86 = vmatpush1.msra.mxu0 0.0
  %87 = vmatprep.subr.mxu0 0.0
  %88 = vmatpush1.msra.mxu0 0.0
  %89 = vmatprep.subr.mxu0 0.0
  %90 = vmatpush1.msra.mxu0 0.0
  %91 = vmatprep.subr.mxu0 0.0
  %92 = vmatpush1.msra.mxu0 0.0
  %93 = vmatprep.subr.mxu0 0.0
  %94 = vmatpush1.msra.mxu0 0.0
  %95 = vmatprep.subr.mxu0 0.0
  %96 = vmatpush1.msra.mxu0 0.0
  %97 = vmatprep.subr.mxu0 0.0
  %98 = vmatpush1.msra.mxu0 0.0
  %99 = vmatprep.subr.mxu0 0.0
  %100 = vmatpush1.msra.mxu0 0.0
  %101 = vmatprep.subr.mxu0 0.0
  %102 = vmatpush1.msra.mxu0 0.0
  %103 = vmatprep.subr.mxu0 0.0
  %104 = vmatpush1.msra.mxu0 0.0
  %105 = vmatprep.subr.mxu0 0.0
  %106 = vmatpush1.msra.mxu0 0.0
  %107 = vmatprep.subr.mxu0 0.0
  %108 = vmatpush1.msra.mxu0 0.0
  %109 = vmatprep.mubr.f32.mxu0 0.0
  %110 = vmatmul.mubr.f32.gmra.mrb[0].mxu0 %v21
  %v111 = vpop.f32.mrb[0].mxu0
  %v112 = vadd.f32 %v43, %v111
  %v113 = vpop.f32.mrb[0].mxu0
  %114 = vdwg.mxu0
  %v115 = vxor.u32 %v112, 2147483648
  %v116 = vmul.f32 %v115, 1.442695
  %v117 = vpow.pop %v116
  %v118 = vadd.f32 %v117, 1.0
  %v119 = vrcp.pop %v118
  %v120 = vmul.f32 1.0, %v119
  %v121 = vmul.f32 %v112, %v120
  %v122 = vld [vmem:[%s3] sm:$0xff]
  %v123 = vld [vmem:[%s3 + $0x8] sm:$0xff]
  %v124 = vld [vmem:[%s3 + $0x10] sm:$0xff]
  %v125 = vld [vmem:[%s3 + $0x18] sm:$0xff]
  %v126 = vld [vmem:[%s3 + $0x20] sm:$0xff]
  %v127 = vld [vmem:[%s3 + $0x28] sm:$0xff]
  %v128 = vld [vmem:[%s3 + $0x30] sm:$0xff]
  %v129 = vld [vmem:[%s3 + $0x38] sm:$0xff]
  %v130 = vld [vmem:[%s3 + $0x40] sm:$0xff]
  %v131 = vld [vmem:[%s3 + $0x48] sm:$0xff]
  %v132 = vld [vmem:[%s3 + $0x50] sm:$0xff]
  %v133 = vld [vmem:[%s3 + $0x58] sm:$0xff]
  %v134 = vld [vmem:[%s3 + $0x60] sm:$0xff]
  %v135 = vld [vmem:[%s3 + $0x68] sm:$0xff]
  %v136 = vld [vmem:[%s3 + $0x70] sm:$0xff]
  %v137 = vld [vmem:[%s3 + $0x78] sm:$0xff]
  %s138 = sld [smem:[#allocation2]]
  %v139 = vstv %s138
  %140 = vmatprep.subr.mxu0 0.0
  %141 = vmatpush1.msra.mxu0 %v122
  %142 = vmatprep.subr.mxu0 0.0
  %143 = vmatpush1.msra.mxu0 %v123
  %144 = vmatprep.subr.mxu0 0.0
  %145 = vmatpush1.msra.mxu0 %v124
  %146 = vmatprep.subr.mxu0 0.0
  %147 = vmatpush1.msra.mxu0 %v125
  %148 = vmatprep.subr.mxu0 0.0
  %149 = vmatpush1.msra.mxu0 %v126
  %150 = vmatprep.subr.mxu0 0.0
  %151 = vmatpush1.msra.mxu0 %v127
  %152 = vmatprep.subr.mxu0 0.0
  %153 = vmatpush1.msra.mxu0 %v128
  %154 = vmatprep.subr.mxu0 0.0
  %155 = vmatpush1.msra.mxu0 %v129
  %156 = vmatprep.subr.mxu0 0.0
  %157 = vmatpush1.msra.mxu0 %v130
  %158 = vmatprep.subr.mxu0 0.0
  %159 = vmatpush1.msra.mxu0 %v131
  %160 = vmatprep.subr.mxu0 0.0
  %161 = vmatpush1.msra.mxu0 %v132
  %162 = vmatprep.subr.mxu0 0.0
  %163 = vmatpush1.msra.mxu0 %v133
  %164 = vmatprep.subr.mxu0 0.0
  %165 = vmatpush1.msra.mxu0 %v134
  %166 = vmatprep.subr.mxu0 0.0
  %167 = vmatpush1.msra.mxu0 %v135
  %168 = vmatprep.subr.mxu0 0.0
  %169 = vmatpush1.msra.mxu0 %v136
  %170 = vmatprep.subr.mxu0 0.0
  %171 = vmatpush1.msra.mxu0 %v137
  %172 = vmatprep.subr.mxu0 0.0
  %173 = vmatpush1.msra.mxu0 0.0
  %174 = vmatprep.subr.mxu0 0.0
  %175 = vmatpush1.msra.mxu0 0.0
  %176 = vmatprep.subr.mxu0 0.0
  %177 = vmatpush1.msra.mxu0 0.0
  %178 = vmatprep.subr.mxu0 0.0
  %179 = vmatpush1.msra.mxu0 0.0
  %180 = vmatprep.subr.mxu0 0.0
  %181 = vmatpush1.msra.mxu0 0.0
  %182 = vmatprep.subr.mxu0 0.0
  %183 = vmatpush1.msra.mxu0 0.0
  %184 = vmatprep.subr.mxu0 0.0
  %185 = vmatpush1.msra.mxu0 0.0
  %186 = vmatprep.subr.mxu0 0.0
  %187 = vmatpush1.msra.mxu0 0.0
  %188 = vmatprep.subr.mxu0 0.0
  %189 = vmatpush1.msra.mxu0 0.0
  %190 = vmatprep.subr.mxu0 0.0
  %191 = vmatpush1.msra.mxu0 0.0
  %192 = vmatprep.subr.mxu0 0.0
  %193 = vmatpush1.msra.mxu0 0.0
  %194 = vmatprep.subr.mxu0 0.0
  %195 = vmatpush1.msra.mxu0 0.0
  %196 = vmatprep.subr.mxu0 0.0
  %197 = vmatpush1.msra.mxu0 0.0
  %198 = vmatprep.subr.mxu0 0.0
  %199 = vmatpush1.msra.mxu0 0.0
  %200 = vmatprep.subr.mxu0 0.0
  %201 = vmatpush1.msra.mxu0 0.0
  %202 = vmatprep.subr.mxu0 0.0
  %203 = vmatpush1.msra.mxu0 0.0
  %204 = vmatprep.mubr.f32.mxu0 0.0
  %205 = vmatmul.mubr.f32.gmra.mrb[0].mxu0 %v121
  %v206 = vpop.f32.mrb[0].mxu0
  %v207 = vadd.f32 %v139, %v206
  %v208 = vpop.f32.mrb[0].mxu0
  %209 = vdwg.mxu0
  %vm210 = vcmask 31744
  %211 = vst.msk [vmem:[%s5] sm:$0xff] %vm210, %v207
  // Predicated region
  $region22: #{tpu_custom_call.1} parent=0 // pred_check
    _
  $region23: #{tpu_custom_call.1} parent=0 // pred_check_branch
    %213 = sbr.rel (0) target = $region25
  $region24: #{tpu_custom_call.1} parent=0 // pred_region
    _
  $region25: #{tpu_custom_call.1} parent=0 // pred_fallthru
    _
  // Predicated region
  $region26: #{tpu_custom_call.1} parent=0 // pred_check
    _
  $region27: #{tpu_custom_call.1} parent=0 // pred_check_branch
    %215 = sbr.rel (0) target = $region29
  $region28: #{tpu_custom_call.1} parent=0 // pred_region
    _
  $region29: #{tpu_custom_call.1} parent=0 // pred_fallthru
    _

</llo_original>
